<compile_context>
chip_gen: v7x
topology: tpu7x:2x2x1
jax: 0.10.0
libtpu: 0.0.40
codegen_flags: <defaults>
</compile_context>

<pallas_src>
import jax
import jax.numpy as jnp
from jax.experimental import pallas as pl
from jax.experimental.pallas import tpu as pltpu


LANE = 128            # TPU lane width (last dim of every vreg)
MAX_TILE_R = 2048     # rows of 128 lanes per grid step (2048*128*4B*4ch = 4 MiB/input)
VMEM_LIMIT = 32 * 1024 * 1024   # scoped-VMEM limit; needed on v5e (default 16 MiB)


def _iou_loss_kernel(inp_ref, lab_ref, out_ref):
    # inp_ref / lab_ref: (4, tile_r, 128); out_ref: (tile_r, 128)
    f32 = jnp.float32
    # Load channels individually: no full-block (4, tile_r, 128) intermediate.
    il = inp_ref[0].astype(f32)
    ir = inp_ref[1].astype(f32)
    it = inp_ref[2].astype(f32)
    ib = inp_ref[3].astype(f32)
    ll = lab_ref[0].astype(f32)
    lr = lab_ref[1].astype(f32)
    lt = lab_ref[2].astype(f32)
    lb = lab_ref[3].astype(f32)

    # Original: x1 = -l, y1 = -t (same for labels).
    #   max(-a, -b) = -min(a, b)  and  |-x| = |x|
    # so |x1_intersection| = |min(l, l_label)| etc. -> no negations needed.
    x2_i = jnp.minimum(ir, lr)
    y2_i = jnp.minimum(ib, lb)
    x1_i_abs = jnp.abs(jnp.minimum(il, ll))
    y1_i_abs = jnp.abs(jnp.minimum(it, lt))

    intersection = (x2_i + x1_i_abs) * (y2_i + y1_i_abs)
    area_inp = (jnp.abs(il) + ir) * (jnp.abs(it) + ib)
    area_lab = (jnp.abs(ll) + lr) * (jnp.abs(lt) + lb)
    union = area_inp + area_lab - intersection

    iou = intersection * pl.reciprocal(union + 1e-8, approx=False)
    out_ref[...] = (1.0 - iou).astype(out_ref.dtype)


def iou_loss(inp, lab):
    """inp, lab: (B, 4, W, H) -> (B, 1, W, H). Mirrors torch IOULoss.forward."""
    B, C, W, H = inp.shape
    assert C == 4, "FCOS regression map must have 4 channels (l, r, t, b)"
    assert lab.shape == inp.shape

    S = W * H
    R = pl.cdiv(S, LANE)          # rows of 128 lanes per (b, c) plane
    s_pad = R * LANE              # minimal 128-lane alignment only

    # ---- tile_r selection ---------------------------------------------------
    if R <= MAX_TILE_R:
        if B == 1 and R >= 16:
            # Guarantee >= 2 parallel grid steps so v7x's second TensorCore
            # shares the work (v5e/v6e are single-TC; the extra step is noise).
            tile_r = ((pl.cdiv(R, 2) + 7) // 8) * 8
        else:
            tile_r = R            # full-extent block (always legal)
    else:
        tile_r = MAX_TILE_R       # multiple of 8; ragged last block is masked

    grid = (B, pl.cdiv(R, tile_r))

    def to_slab(x):
        x = x.reshape(B, C, S)    # free (contiguous)
        if s_pad != S:
            # TODO(synk): ragged tail (S % 128 != 0) still costs one XLA pad
            # copy; a fully zero-copy path needs an in-kernel masked tail via
            # manual DMA of the residual bytes.
            x = jnp.pad(x, ((0, 0), (0, 0), (0, s_pad - S)))
        return x.reshape(B, C, R, LANE)   # free when no pad was needed

    inp_s = to_slab(inp)
    lab_s = to_slab(lab)

    in_spec = pl.BlockSpec((pl.Squeezed(), C, tile_r, LANE),
                           lambda b, r: (b, 0, r, 0))
    out_spec = pl.BlockSpec((pl.Squeezed(), tile_r, LANE),
                            lambda b, r: (b, r, 0))

    out = pl.pallas_call(
        _iou_loss_kernel,
        out_shape=jax.ShapeDtypeStruct((B, R, LANE), inp.dtype),
        grid_spec=pltpu.PrefetchScalarGridSpec(
            num_scalar_prefetch=0,
            grid=grid,
            in_specs=[in_spec, in_spec],
            out_specs=out_spec,
        ),
        compiler_params=pltpu.CompilerParams(
            dimension_semantics=("parallel", "parallel"),
            vmem_limit_bytes=VMEM_LIMIT),
    )(inp_s, lab_s)

    if s_pad == S:
        return out.reshape(B, 1, W, H)                 # zero-copy
    return out.reshape(B, s_pad)[:, :S].reshape(B, 1, W, H)


def _iou_loss_ref(inp, lab):
    """Pure-JAX reference mirroring the PyTorch forward exactly."""
    x1, x2 = -inp[:, 0], inp[:, 1]
    y1, y2 = -inp[:, 2], inp[:, 3]
    lx1, lx2 = -lab[:, 0], lab[:, 1]
    ly1, ly2 = -lab[:, 2], lab[:, 3]
    x1_i = jnp.maximum(x1, lx1)
    x2_i = jnp.minimum(x2, lx2)
    y1_i = jnp.maximum(y1, ly1)
    y2_i = jnp.minimum(y2, ly2)
    inter = (x2_i + jnp.abs(x1_i)) * (y2_i + jnp.abs(y1_i))
    union = ((jnp.abs(x1) + x2) * (jnp.abs(y1) + y2)
             + (jnp.abs(lx1) + lx2) * (jnp.abs(ly1) + ly2) - inter)
    return (1.0 - inter / (union + 1e-08))[:, None]


if __name__ == "__main__":
    key = jax.random.PRNGKey(0)
    k1, k2, k3, k4, k5, k6 = jax.random.split(key, 6)

    # Primary check: the module's natural small shape (S % 128 == 0, zero-copy).
    B, C, W, H = 2, 4, 16, 16
    inp = jax.random.uniform(k1, (B, C, W, H), jnp.float32, 0.1, 5.0)
    lab = jax.random.uniform(k2, (B, C, W, H), jnp.float32, 0.1, 5.0)
    out = iou_loss(inp, lab)
    jax.block_until_ready(out)
    ref = _iou_loss_ref(inp, lab)
    assert out.shape == (B, 1, W, H)
    assert jnp.allclose(out, ref, atol=1e-5, rtol=1e-5)

    # Secondary check: spatial size that is not a multiple of 128 (ragged tail).
    W2, H2 = 7, 9
    inp2 = jax.random.uniform(k3, (B, C, W2, H2), jnp.float32, 0.1, 5.0)
    lab2 = jax.random.uniform(k4, (B, C, W2, H2), jnp.float32, 0.1, 5.0)
    out2 = iou_loss(inp2, lab2)
    jax.block_until_ready(out2)
    ref2 = _iou_loss_ref(inp2, lab2)
    assert out2.shape == (B, 1, W2, H2)
    assert jnp.allclose(out2, ref2, atol=1e-5, rtol=1e-5)

    # Third check: batch == 1 path that splits the spatial axis into >=2
    # parallel grid steps (v7x second-TensorCore coverage).
    W3, H3 = 64, 64
    inp3 = jax.random.uniform(k5, (1, C, W3, H3), jnp.float32, 0.1, 5.0)
    lab3 = jax.random.uniform(k6, (1, C, W3, H3), jnp.float32, 0.1, 5.0)
    out3 = iou_loss(inp3, lab3)
    jax.block_until_ready(out3)
    ref3 = _iou_loss_ref(inp3, lab3)
    assert out3.shape == (1, 1, W3, H3)
    assert jnp.allclose(out3, ref3, atol=1e-5, rtol=1e-5)

    print("KERNEL_OK")
</pallas_src>

<mosaic_0001>
module attributes {stable_mosaic.version = 11 : i64} {
  func.func @_iou_loss_kernel(%arg0: i32, %arg1: i32, %arg2: memref<1x4x2x128xf32, #tpu.memory_space<vmem>>, %arg3: memref<1x4x2x128xf32, #tpu.memory_space<vmem>>, %arg4: memref<1x2x128xf32, #tpu.memory_space<vmem>>) attributes {dimension_semantics = [#tpu.dimension_semantics<parallel>, #tpu.dimension_semantics<parallel>], iteration_bounds = array<i64: 2, 1>, scalar_prefetch = 0 : i64, scratch_operands = 0 : i64, tpu.core_type = #tpu.core_type<tc>, window_params = [{transform_indices = @transform_0, window_bounds = array<i64: 1, 4, 2, 128>}, {transform_indices = @transform_1, window_bounds = array<i64: 1, 4, 2, 128>}, {transform_indices = @transform_2, window_bounds = array<i64: 1, 2, 128>}]} {
    %c0 = arith.constant 0 : index
    %c0_0 = arith.constant 0 : index
    %c0_1 = arith.constant 0 : index
    %c0_2 = arith.constant 0 : index
    %0 = vector.load %arg2[%c0, %c0_0, %c0_1, %c0_2] : memref<1x4x2x128xf32, #tpu.memory_space<vmem>>, vector<1x1x2x128xf32>
    %1 = vector.shape_cast %0 : vector<1x1x2x128xf32> to vector<2x128xf32>
    %c0_3 = arith.constant 0 : index
    %c1 = arith.constant 1 : index
    %c0_4 = arith.constant 0 : index
    %c0_5 = arith.constant 0 : index
    %2 = vector.load %arg2[%c0_3, %c1, %c0_4, %c0_5] : memref<1x4x2x128xf32, #tpu.memory_space<vmem>>, vector<1x1x2x128xf32>
    %3 = vector.shape_cast %2 : vector<1x1x2x128xf32> to vector<2x128xf32>
    %c0_6 = arith.constant 0 : index
    %c2 = arith.constant 2 : index
    %c0_7 = arith.constant 0 : index
    %c0_8 = arith.constant 0 : index
    %4 = vector.load %arg2[%c0_6, %c2, %c0_7, %c0_8] : memref<1x4x2x128xf32, #tpu.memory_space<vmem>>, vector<1x1x2x128xf32>
    %5 = vector.shape_cast %4 : vector<1x1x2x128xf32> to vector<2x128xf32>
    %c0_9 = arith.constant 0 : index
    %c3 = arith.constant 3 : index
    %c0_10 = arith.constant 0 : index
    %c0_11 = arith.constant 0 : index
    %6 = vector.load %arg2[%c0_9, %c3, %c0_10, %c0_11] : memref<1x4x2x128xf32, #tpu.memory_space<vmem>>, vector<1x1x2x128xf32>
    %7 = vector.shape_cast %6 : vector<1x1x2x128xf32> to vector<2x128xf32>
    %c0_12 = arith.constant 0 : index
    %c0_13 = arith.constant 0 : index
    %c0_14 = arith.constant 0 : index
    %c0_15 = arith.constant 0 : index
    %8 = vector.load %arg3[%c0_12, %c0_13, %c0_14, %c0_15] : memref<1x4x2x128xf32, #tpu.memory_space<vmem>>, vector<1x1x2x128xf32>
    %9 = vector.shape_cast %8 : vector<1x1x2x128xf32> to vector<2x128xf32>
    %c0_16 = arith.constant 0 : index
    %c1_17 = arith.constant 1 : index
    %c0_18 = arith.constant 0 : index
    %c0_19 = arith.constant 0 : index
    %10 = vector.load %arg3[%c0_16, %c1_17, %c0_18, %c0_19] : memref<1x4x2x128xf32, #tpu.memory_space<vmem>>, vector<1x1x2x128xf32>
    %11 = vector.shape_cast %10 : vector<1x1x2x128xf32> to vector<2x128xf32>
    %c0_20 = arith.constant 0 : index
    %c2_21 = arith.constant 2 : index
    %c0_22 = arith.constant 0 : index
    %c0_23 = arith.constant 0 : index
    %12 = vector.load %arg3[%c0_20, %c2_21, %c0_22, %c0_23] : memref<1x4x2x128xf32, #tpu.memory_space<vmem>>, vector<1x1x2x128xf32>
    %13 = vector.shape_cast %12 : vector<1x1x2x128xf32> to vector<2x128xf32>
    %c0_24 = arith.constant 0 : index
    %c3_25 = arith.constant 3 : index
    %c0_26 = arith.constant 0 : index
    %c0_27 = arith.constant 0 : index
    %14 = vector.load %arg3[%c0_24, %c3_25, %c0_26, %c0_27] : memref<1x4x2x128xf32, #tpu.memory_space<vmem>>, vector<1x1x2x128xf32>
    %15 = vector.shape_cast %14 : vector<1x1x2x128xf32> to vector<2x128xf32>
    %16 = arith.minimumf %3, %11 : vector<2x128xf32>
    %17 = arith.minimumf %7, %15 : vector<2x128xf32>
    %18 = arith.minimumf %1, %9 : vector<2x128xf32>
    %19 = math.absf %18 : vector<2x128xf32>
    %20 = arith.minimumf %5, %13 : vector<2x128xf32>
    %21 = math.absf %20 : vector<2x128xf32>
    %22 = arith.addf %16, %19 : vector<2x128xf32>
    %23 = arith.addf %17, %21 : vector<2x128xf32>
    %24 = arith.mulf %22, %23 : vector<2x128xf32>
    %25 = math.absf %1 : vector<2x128xf32>
    %26 = arith.addf %25, %3 : vector<2x128xf32>
    %27 = math.absf %5 : vector<2x128xf32>
    %28 = arith.addf %27, %7 : vector<2x128xf32>
    %29 = arith.mulf %26, %28 : vector<2x128xf32>
    %30 = math.absf %9 : vector<2x128xf32>
    %31 = arith.addf %30, %11 : vector<2x128xf32>
    %32 = math.absf %13 : vector<2x128xf32>
    %33 = arith.addf %32, %15 : vector<2x128xf32>
    %34 = arith.mulf %31, %33 : vector<2x128xf32>
    %35 = arith.addf %29, %34 : vector<2x128xf32>
    %36 = arith.subf %35, %24 : vector<2x128xf32>
    %cst = arith.constant 9.99999993E-9 : f32
    %37 = vector.broadcast %cst : f32 to vector<2x128xf32>
    %38 = arith.addf %36, %37 : vector<2x128xf32>
    %39 = tpu.reciprocal %38 : vector<2x128xf32> -> vector<2x128xf32>
    %40 = arith.mulf %24, %39 : vector<2x128xf32>
    %cst_28 = arith.constant 1.000000e+00 : f32
    %41 = vector.broadcast %cst_28 : f32 to vector<2x128xf32>
    %42 = arith.subf %41, %40 : vector<2x128xf32>
    %c0_29 = arith.constant 0 : index
    %c0_30 = arith.constant 0 : index
    %c0_31 = arith.constant 0 : index
    %43 = vector.load %arg4[%c0_29, %c0_30, %c0_31] : memref<1x2x128xf32, #tpu.memory_space<vmem>>, vector<1x2x128xf32>
    %44 = vector.shape_cast %43 : vector<1x2x128xf32> to vector<2x128xf32>
    %45 = vector.shape_cast %42 : vector<2x128xf32> to vector<1x2x128xf32>
    tpu.vector_store %arg4[%c0_29, %c0_30, %c0_31], %45 {strides = array<i32>} : memref<1x2x128xf32, #tpu.memory_space<vmem>>, vector<1x2x128xf32>,
    return
  }
  func.func @transform_0(%arg0: i32, %arg1: i32) -> (i32, i32, i32, i32) {
    %c0_i32 = arith.constant 0 : i32
    %c0_i32_0 = arith.constant 0 : i32
    %c0_i32_1 = arith.constant 0 : i32
    return %arg0, %c0_i32, %arg1, %c0_i32_0 : i32, i32, i32, i32
  }
  func.func @transform_1(%arg0: i32, %arg1: i32) -> (i32, i32, i32, i32) {
    %c0_i32 = arith.constant 0 : i32
    %c0_i32_0 = arith.constant 0 : i32
    %c0_i32_1 = arith.constant 0 : i32
    return %arg0, %c0_i32, %arg1, %c0_i32_0 : i32, i32, i32, i32
  }
  func.func @transform_2(%arg0: i32, %arg1: i32) -> (i32, i32, i32) {
    %c0_i32 = arith.constant 0 : i32
    %c0_i32_0 = arith.constant 0 : i32
    return %arg0, %arg1, %c0_i32 : i32, i32, i32
  }
}

</mosaic_0001>

<llo_original>
// kernel: tpu_custom_call.1
$region0: #{tpu_custom_call.1}
  #allocation0 [shape = 'u32[]', space=smem, size = 0x4, offset = 0x4, fixed_abs, tag = 'smem constant byte address 0x4 - core index']
  #allocation1 [shape = 'u32[144,128]{1,0:T(1,128)}', space=vmem, size = 0x12000, scoped, tag = 'internal scratch']
  %s0 = inlined_call_operand.hbm [shape: f32[2,4,2,128], index: 0, kind: input, shape index: {}]
  %s1 = inlined_call_operand.hbm [shape: f32[2,4,2,128], index: 1, kind: input, shape index: {}]
  %s2 = inlined_call_operand.hbm [shape: f32[2,2,128], index: 2, kind: output, shape index: {}]
  %s3 = sld [smem:[#allocation0]]
  $region49: #{tpu_custom_call.1} parent=0
    _
  %s5 = ssub.s32 1, %s3
  %s6 = scalar_select 0, %s5, %s3
  $region1: #{tpu_custom_call.1} parent=0
    #allocation2 [shape = 'u8[8192]{0}', space=vmem, size = 0x2000, scoped, tag = 'input window, operand 0']
    #allocation3 [shape = 's32[2]{0}', space=sflag, size = 0x8, scoped, tag = 'scoped memory for tpu_custom_call.1']
    #allocation4 [shape = 's32[2]{0}', space=sflag, size = 0x8, scoped, tag = 'scoped memory for tpu_custom_call.1']
    #allocation5 [shape = 'u8[8192]{0}', space=vmem, size = 0x2000, scoped, tag = 'input window, operand 1']
    #allocation6 [shape = 's32[2]{0}', space=sflag, size = 0x8, scoped, tag = 'scoped memory for tpu_custom_call.1']
    #allocation7 [shape = 'u8[2048]{0}', space=vmem, size = 0x800, scoped, tag = 'output window, operand 0']
    %7 = vsyncpa [#allocation3], 0
    %s8 = scalar_lea.sflag [#allocation3], 1
    %9 = vsyncpa %s8, 0
    %10 = vsyncpa [#allocation6], 0
    %s11 = scalar_lea.sflag [#allocation6], 1
    %12 = vsyncpa %s11, 0
    %13 = vsyncpa [#allocation4], 0
    %s14 = scalar_lea.sflag [#allocation4], 1
    %15 = vsyncpa %s14, 0
    loop: start=0, step=1, limit=4
    $region2: #{tpu_custom_call.1} parent=1 // loop_pre_header
      _
    $region3: #{tpu_custom_call.1} parent=1 // loop_header
      %s17 = sphi 0, %s21
      %p18 = scmp.ge.s32.totalorder %s17, 4
      %s24 = sphi 0, %s36
      %s25 = sphi 0, %s32
      %s26 = sphi 0, %s24
      %s27 = sphi 0, %s25
      %s28 = sphi 0, %s26
      %s29 = sphi 0, %s27
      %s41 = sphi 0, %s43
      %s44 = sphi 0, %s41
      %s45 = sphi 0, %s44
      %s61 = sphi 0, %s45
      %s69 = sphi 0, %s71
      %s72 = sphi 0, %s69
      %s73 = sphi 0, %s72
      %s89 = sphi 0, %s73
      %s97 = sphi 0, %s99
      %s100 = sphi 0, %s97
      %s101 = sphi 0, %s100
      %s117 = sphi 0, %s101
    $region4: #{tpu_custom_call.1} parent=1 // loop_header_branch
      %20 = sbr.rel (%p18) target = $region8
    $region5: #{tpu_custom_call.1} parent=1 // loop_body
      %s22 = ssub.s32 %s17, 1
      %s23 = ssub.s32 %s17, 2
      %s30 = sadd.s32 1, %s25
      %p31 = scmp.ge.s32.totalorder %s30, 1
      %s32 = scalar_select %p31, 0, %s30
      %s33 = sadd.s32 1, %s24
      %s34 = scalar_select %p31, %s33, %s24
      %p35 = scmp.ge.s32.totalorder %s34, 2
      %s36 = scalar_select %p35, 0, %s34
      %s37 = ssub.s32 %s24, %s36
      %s38 = ssub.s32 %s25, %s32
      %s39 = sor.u32 %s37, %s38
      %p40 = scmp.eq.s32.totalorder %s39, 0
      %s42 = sadd.s32 %s41, 1
      %s43 = scalar_select %p40, %s41, %s42
      %p46 = pneg %p40
      %p47 = scmp.eq.s32.totalorder %s17, 1
      %p48 = por %p46, %p47
      %p49 = scmp.ne.s32.totalorder %s41, %s44
      %p50 = scmp.eq.s32.totalorder %s17, 0
      %p51 = por %p49, %p50
      %p52 = scmp.ne.s32.totalorder %s41, %s44
      %p53 = scmp.eq.s32.totalorder %s22, 1
      %p54 = por %p52, %p53
      %p55 = scmp.ne.s32.totalorder %s44, %s45
      %p56 = scmp.eq.s32.totalorder %s22, 0
      %p57 = por %p55, %p56
      %p58 = scmp.ne.s32.totalorder %s44, %s45
      %p59 = scmp.eq.s32.totalorder %s23, 1
      %p60 = por %p58, %p59
      %p62 = scmp.ne.s32.totalorder %s45, %s61
      %p63 = scmp.eq.s32.totalorder %s23, 0
      %p64 = por %p62, %p63
      %s65 = ssub.s32 %s24, %s36
      %s66 = ssub.s32 %s25, %s32
      %s67 = sor.u32 %s65, %s66
      %p68 = scmp.eq.s32.totalorder %s67, 0
      %s70 = sadd.s32 %s69, 1
      %s71 = scalar_select %p68, %s69, %s70
      %p74 = pneg %p68
      %p75 = scmp.eq.s32.totalorder %s17, 1
      %p76 = por %p74, %p75
      %p77 = scmp.ne.s32.totalorder %s69, %s72
      %p78 = scmp.eq.s32.totalorder %s17, 0
      %p79 = por %p77, %p78
      %p80 = scmp.ne.s32.totalorder %s69, %s72
      %p81 = scmp.eq.s32.totalorder %s22, 1
      %p82 = por %p80, %p81
      %p83 = scmp.ne.s32.totalorder %s72, %s73
      %p84 = scmp.eq.s32.totalorder %s22, 0
      %p85 = por %p83, %p84
      %p86 = scmp.ne.s32.totalorder %s72, %s73
      %p87 = scmp.eq.s32.totalorder %s23, 1
      %p88 = por %p86, %p87
      %p90 = scmp.ne.s32.totalorder %s73, %s89
      %p91 = scmp.eq.s32.totalorder %s23, 0
      %p92 = por %p90, %p91
      %s93 = ssub.s32 %s24, %s36
      %s94 = ssub.s32 %s25, %s32
      %s95 = sor.u32 %s93, %s94
      %p96 = scmp.eq.s32.totalorder %s95, 0
      %s98 = sadd.s32 %s97, 1
      %s99 = scalar_select %p96, %s97, %s98
      %p102 = pneg %p96
      %p103 = scmp.eq.s32.totalorder %s17, 1
      %p104 = por %p102, %p103
      %p105 = scmp.ne.s32.totalorder %s97, %s100
      %p106 = scmp.eq.s32.totalorder %s17, 0
      %p107 = por %p105, %p106
      %p108 = scmp.ne.s32.totalorder %s97, %s100
      %p109 = scmp.eq.s32.totalorder %s22, 1
      %p110 = por %p108, %p109
      %p111 = scmp.ne.s32.totalorder %s100, %s101
      %p112 = scmp.eq.s32.totalorder %s22, 0
      %p113 = por %p111, %p112
      %p114 = scmp.ne.s32.totalorder %s100, %s101
      %p115 = scmp.eq.s32.totalorder %s23, 1
      %p116 = por %p114, %p115
      %p118 = scmp.ne.s32.totalorder %s101, %s117
      %p119 = scmp.eq.s32.totalorder %s23, 0
      %p120 = por %p118, %p119
      %p121 = scmp.le.s32.totalorder 1, %s17
      %p122 = scmp.lt.s32.totalorder %s17, 3
      %p123 = pnand %p121, %p122
      %p124 = pneg %p123
      // Predicated region
      $region9: #{tpu_custom_call.1} parent=5 // pred_check
        _
      $region10: #{tpu_custom_call.1} parent=5 // pred_check_branch
        %126 = sbr.rel (%p123) target = $region12
      $region11: #{tpu_custom_call.1} parent=5 // pred_region
        %s127 = ssub.s32 %s17, 1
      $region12: #{tpu_custom_call.1} parent=5 // pred_fallthru
        _
      %p128 = scmp.lt.s32.totalorder %s17, 2
      // Predicated region
      $region13: #{tpu_custom_call.1} parent=5 // pred_check
        %p129 = pneg %p128
      $region14: #{tpu_custom_call.1} parent=5 // pred_check_branch
        %131 = sbr.rel (%p129) target = $region16
      $region15: #{tpu_custom_call.1} parent=5 // pred_region
        // Predicated region
        $region17: #{tpu_custom_call.1} parent=15 // pred_check
          %p132 = pneg %p51
        $region18: #{tpu_custom_call.1} parent=15 // pred_check_branch
          %134 = sbr.rel (%p132) target = $region20
        $region19: #{tpu_custom_call.1} parent=15 // pred_region
          %s135 = sand.u32 %s41, 1
          %s136 = scalar_lea.sflag [#allocation3], %s135
          %s137 = sand.u32 %s41, 1
          %s138 = smul.addr %s137, 8
          %s139 = scalar_lea.vmem [#allocation2], %s138
          %s141 = ssub.s32 128, 128
          %142 = vsyncadd %s136, %s141
          %s143 = smul.addr %s24, 4
          %s144 = sadd.s32 %s25, %s143
          %s145 = smul.addr %s144, 32
          %s146 = scalar_lea.hbm %s0, %s145
          %s147 = sshll.u32 %s139, 4
          %s148 = int_to_ptr.vmem [resolvable:$true] %s147
          %153 = dma.hbm_to_vmem [thread:$0]  %s146, 128, %s148, %s136, 32, 32, 2
        $region20: #{tpu_custom_call.1} parent=15 // pred_fallthru
          _
        // Predicated region
        $region21: #{tpu_custom_call.1} parent=15 // pred_check
          %p154 = pneg %p79
        $region22: #{tpu_custom_call.1} parent=15 // pred_check_branch
          %156 = sbr.rel (%p154) target = $region24
        $region23: #{tpu_custom_call.1} parent=15 // pred_region
          %s157 = sand.u32 %s69, 1
          %s158 = scalar_lea.sflag [#allocation6], %s157
          %s159 = sand.u32 %s69, 1
          %s160 = smul.addr %s159, 8
          %s161 = scalar_lea.vmem [#allocation5], %s160
          %s163 = ssub.s32 128, 128
          %164 = vsyncadd %s158, %s163
          %s165 = smul.addr %s24, 4
          %s166 = sadd.s32 %s25, %s165
          %s167 = smul.addr %s166, 32
          %s168 = scalar_lea.hbm %s1, %s167
          %s169 = sshll.u32 %s161, 4
          %s170 = int_to_ptr.vmem [resolvable:$true] %s169
          %175 = dma.hbm_to_vmem [thread:$0]  %s168, 128, %s170, %s158, 32, 32, 2
        $region24: #{tpu_custom_call.1} parent=15 // pred_fallthru
          _
      $region16: #{tpu_custom_call.1} parent=5 // pred_fallthru
        _
      %p176 = scmp.le.s32.totalorder 1, %s17
      %p177 = scmp.lt.s32.totalorder %s17, 3
      %p178 = pnand %p176, %p177
      %p179 = pneg %p178
      // Predicated region
      $region25: #{tpu_custom_call.1} parent=5 // pred_check
        _
      $region26: #{tpu_custom_call.1} parent=5 // pred_check_branch
        %181 = sbr.rel (%p178) target = $region28
      $region27: #{tpu_custom_call.1} parent=5 // pred_region
        %s182 = ssub.s32 %s17, 1
        %s183 = sand.u32 %s44, 1
        %s184 = scalar_lea.sflag [#allocation3], %s183
        %s185 = sand.u32 %s44, 1
        %s186 = smul.addr %s185, 8
        %s187 = scalar_lea.vmem [#allocation2], %s186
        // Predicated region
        $region29: #{tpu_custom_call.1} parent=27 // pred_check
          %p188 = pneg %p57
        $region30: #{tpu_custom_call.1} parent=27 // pred_check_branch
          %190 = sbr.rel (%p188) target = $region32
        $region31: #{tpu_custom_call.1} parent=27 // pred_region
          %191 = dma.done %s184, 128
        $region32: #{tpu_custom_call.1} parent=27 // pred_fallthru
          _
        %s192 = sand.u32 %s72, 1
        %s193 = scalar_lea.sflag [#allocation6], %s192
        %s194 = sand.u32 %s72, 1
        %s195 = smul.addr %s194, 8
        %s196 = scalar_lea.vmem [#allocation5], %s195
        // Predicated region
        $region33: #{tpu_custom_call.1} parent=27 // pred_check
          %p197 = pneg %p85
        $region34: #{tpu_custom_call.1} parent=27 // pred_check_branch
          %199 = sbr.rel (%p197) target = $region36
        $region35: #{tpu_custom_call.1} parent=27 // pred_region
          %200 = dma.done %s193, 128
        $region36: #{tpu_custom_call.1} parent=27 // pred_fallthru
          _
        %s201 = sand.u32 %s44, 1
        %s202 = scalar_lea.sflag [#allocation3], %s201
        %s203 = sand.u32 %s44, 1
        %s204 = smul.addr %s203, 8
        %s205 = scalar_lea.vmem [#allocation2], %s204
        %p206 = pneg %p57
        %p207 = pneg %p54
        %s208 = sand.u32 %s72, 1
        %s209 = scalar_lea.sflag [#allocation6], %s208
        %s210 = sand.u32 %s72, 1
        %s211 = smul.addr %s210, 8
        %s212 = scalar_lea.vmem [#allocation5], %s211
        %p213 = pneg %p85
        %p214 = pneg %p82
        %p215 = pneg %p113
        %p216 = pneg %p110
        %s217 = sand.u32 %s100, 1
        %s218 = scalar_lea.sflag [#allocation4], %s217
        %s219 = sand.u32 %s100, 1
        %s220 = smul.addr %s219, 2
        %s221 = scalar_lea.vmem [#allocation7], %s220
        %v222 = vld [vmem:[%s187] sm:$0x3]
        %s223 = scalar_lea.vmem %s187, 2 [#allocation2]
        %v224 = vld [vmem:[%s223] sm:$0x3]
        %s225 = scalar_lea.vmem %s187, 4 [#allocation2]
        %v226 = vld [vmem:[%s225] sm:$0x3]
        %s227 = scalar_lea.vmem %s187, 6 [#allocation2]
        %v228 = vld [vmem:[%s227] sm:$0x3]
        %v229 = vld [vmem:[%s196] sm:$0x3]
        %s230 = scalar_lea.vmem %s196, 2 [#allocation5]
        %v231 = vld [vmem:[%s230] sm:$0x3]
        %s232 = scalar_lea.vmem %s196, 4 [#allocation5]
        %v233 = vld [vmem:[%s232] sm:$0x3]
        %s234 = scalar_lea.vmem %s196, 6 [#allocation5]
        %v235 = vld [vmem:[%s234] sm:$0x3]
        %v236 = vmin.f32 %v224, %v231
        %v237 = vmin.f32 %v228, %v235
        %v238 = vmin.f32 %v222, %v229
        %v239 = vand.u32 2147483647, %v238
        %v240 = vmin.f32 %v226, %v233
        %v241 = vand.u32 2147483647, %v240
        %v242 = vadd.f32 %v236, %v239
        %v243 = vadd.f32 %v237, %v241
        %v244 = vmul.f32 %v242, %v243
        %v245 = vand.u32 2147483647, %v222
        %v246 = vadd.f32 %v245, %v224
        %v247 = vand.u32 2147483647, %v226
        %v248 = vadd.f32 %v247, %v228
        %v249 = vmul.f32 %v246, %v248
        %v250 = vand.u32 2147483647, %v229
        %v251 = vadd.f32 %v250, %v231
        %v252 = vand.u32 2147483647, %v233
        %v253 = vadd.f32 %v252, %v235
        %v254 = vmul.f32 %v251, %v253
        %v255 = vadd.f32 %v249, %v254
        %v256 = vsub.f32 %v255, %v244
        %v257 = vadd.f32 %v256, 1e-08
        %v258 = vrcp.pop %v257
        %v259 = vmul.f32 %v244, %v258
        %v260 = vsub.f32 1.0, %v259
        %261 = vst [vmem:[%s221] sm:$0x3] %v260
        %s262 = sand.u32 %s100, 1
        %s263 = scalar_lea.sflag [#allocation4], %s262
        %s264 = sand.u32 %s100, 1
        %s265 = smul.addr %s264, 2
        %s266 = scalar_lea.vmem [#allocation7], %s265
        // Predicated region
        $region37: #{tpu_custom_call.1} parent=27 // pred_check
          %p267 = pneg %p110
        $region38: #{tpu_custom_call.1} parent=27 // pred_check_branch
          %269 = sbr.rel (%p267) target = $region40
        $region39: #{tpu_custom_call.1} parent=27 // pred_region
          %s271 = ssub.s32 32, 32
          %272 = vsyncadd %s263, %s271
          %s273 = sadd.s32 %s27, %s26
          %s274 = smul.addr %s273, 32
          %s275 = scalar_lea.hbm %s2, %s274
          %s277 = sshll.u32 %s266, 4
          %s278 = int_to_ptr.vmem [resolvable:$true] %s277
          %280 = dma.vmem_to_hbm [thread:$0]  %s278, 32, %s275, %s263
        $region40: #{tpu_custom_call.1} parent=27 // pred_fallthru
          _
      $region28: #{tpu_custom_call.1} parent=5 // pred_fallthru
        _
      %p281 = scmp.le.s32.totalorder 2, %s17
      // Predicated region
      $region41: #{tpu_custom_call.1} parent=5 // pred_check
        %p282 = pneg %p281
      $region42: #{tpu_custom_call.1} parent=5 // pred_check_branch
        %284 = sbr.rel (%p282) target = $region44
      $region43: #{tpu_custom_call.1} parent=5 // pred_region
        %s285 = ssub.s32 %s17, 2
        // Predicated region
        $region45: #{tpu_custom_call.1} parent=43 // pred_check
          %p286 = pneg %p116
        $region46: #{tpu_custom_call.1} parent=43 // pred_check_branch
          %288 = sbr.rel (%p286) target = $region48
        $region47: #{tpu_custom_call.1} parent=43 // pred_region
          %s289 = sand.u32 %s101, 1
          %s290 = scalar_lea.sflag [#allocation4], %s289
          %s291 = sand.u32 %s101, 1
          %s292 = smul.addr %s291, 2
          %s293 = scalar_lea.vmem [#allocation7], %s292
          %294 = dma.done %s290, 32
        $region48: #{tpu_custom_call.1} parent=43 // pred_fallthru
          _
      $region44: #{tpu_custom_call.1} parent=5 // pred_fallthru
        _
    $region6: #{tpu_custom_call.1} parent=1 // loop_footer
      %s21 = sadd.s32 1, %s17
    $region7: #{tpu_custom_call.1} parent=1 // loop_footer_branch
      %16 = sbr.rel target = $region3
    $region8: #{tpu_custom_call.1} parent=1 // loop_exit
      _
    %295 = vsyncpa [#allocation3], 1
    %s296 = scalar_lea.sflag [#allocation3], 1
    %297 = vsyncpa %s296, 1
    %298 = vsyncpa [#allocation6], 1
    %s299 = scalar_lea.sflag [#allocation6], 1
    %300 = vsyncpa %s299, 1
    %301 = vsyncpa [#allocation4], 1
    %s302 = scalar_lea.sflag [#allocation4], 1
    %303 = vsyncpa %s302, 1

</llo_original>
